<compile_context>
chip_gen: v5e
topology: v5e:2x2
jax: 0.10.0
libtpu: 0.0.40
codegen_flags: <defaults>
</compile_context>

<pallas_src>
import functools

import jax
import jax.numpy as jnp
from jax import lax
from jax.experimental import pallas as pl
from jax.experimental.pallas import tpu as pltpu


def _single_layer_kernel(x_ref, w_ref, o_ref, col_ref, *, H, W):
    # x_ref:   (Nb, Cin, H*W)        flattened NCHW input block (Nb images)
    # w_ref:   (G, 9*Cin + 1)        im2col weights, bias folded as last column
    # o_ref:   (Nb, Cin+G, H*W)      concat([x, relu(conv(x))], channel axis)
    # col_ref: (9*Cin + 1, Nb*H*W)   VMEM scratch: im2col matrix + ones row
    Nb, cin, HW = x_ref.shape

    # Border masks, hoisted out of the tap loop (one iota/compare set per grid
    # step, shared by all 9 taps and all Nb images).
    pos = lax.broadcasted_iota(jnp.int32, (cin, HW), 1)   # flat pixel index
    col = pos % W                                         # column index
    ok_up = pos >= W                                      # dy = -1 has a source row
    ok_down = pos < (H - 1) * W                           # dy = +1 has a source row
    ok_left = col >= 1                                    # dx = -1 has a source col
    ok_right = col <= W - 2                               # dx = +1 has a source col

    # Ones row that multiplies the bias column of w_ref.
    col_ref[9 * cin:9 * cin + 1, :] = jnp.ones((1, Nb * HW), dtype=col_ref.dtype)

    # Build the im2col matrix: 9 lane-rotated, border-masked copies of each
    # image, written into the aligned VMEM scratch (lane offsets are multiples
    # of HW = multiple of 128).
    for n in range(Nb):                       # static; Nb is tiny
        x = x_ref[n].astype(col_ref.dtype)    # (Cin, HW)
        tap = 0
        for dy in (-1, 0, 1):
            for dx in (-1, 0, 1):
                s = dy * W + dx               # want shifted[p] = x_flat[p + s]
                if s == 0:
                    xs = x
                else:
                    xs = pltpu.roll(x, shift=(-s) % HW, axis=1)
                mask = None
                if dy == -1:
                    mask = ok_up
                elif dy == 1:
                    mask = ok_down
                if dx == -1:
                    mask = ok_left if mask is None else mask & ok_left
                elif dx == 1:
                    mask = ok_right if mask is None else mask & ok_right
                if mask is not None:
                    xs = jnp.where(mask, xs, 0.0)
                col_ref[tap * cin:(tap + 1) * cin, n * HW:(n + 1) * HW] = xs
                tap += 1

    # One MXU matmul for the whole 3x3 conv (+ bias) over all Nb images.
    conv = jnp.dot(w_ref[...], col_ref[...], preferred_element_type=jnp.float32)
    conv = jnp.maximum(conv, 0.0)             # ReLU; bias already folded in

    # Channel concat written as a single contiguous (Cin+G, HW) slab per image.
    for n in range(Nb):
        slab = jnp.concatenate(
            [x_ref[n], conv[:, n * HW:(n + 1) * HW].astype(o_ref.dtype)], axis=0)
        o_ref[n] = slab


def _pick_batch_block(N, Cin, G, HW, dtype_bytes=4):
    """Largest batch block that (a) divides N, (b) keeps >=2 grid steps when
    possible (v7x has 2 TensorCores), (c) keeps per-step VMEM modest."""
    budget = 4 * 1024 * 1024
    per_image = (9 * Cin + 1 + 2 * (2 * Cin + G)) * HW * dtype_bytes
    best = 1
    for nb in range(1, N + 1):
        if N % nb:
            continue
        if N // nb < min(N, 2):
            continue
        if nb * per_image > budget:
            continue
        best = nb
    return best


@jax.jit
def single_layer_forward(x_nchw, weight_oihw, bias):
    """x_nchw: (N, Cin, H, W); weight_oihw: (G, Cin, 3, 3); bias: (G,)."""
    N, Cin, H, W = x_nchw.shape
    G = weight_oihw.shape[0]
    HW = H * W

    Nb = _pick_batch_block(N, Cin, G, HW)
    grid_n = N // Nb

    # Metadata-only reshape: NCHW stays NCHW, spatial dims flattened so the
    # kernel's lane axis is H*W (lane-dense) instead of the tiny channel axis.
    x_flat = x_nchw.reshape(N, Cin, HW)

    # (G, Cin, 3, 3) -> (G, 3, 3, Cin) -> (G, 9*Cin): tap-major, channel-minor
    # order matching the in-kernel im2col; bias folded in as an extra column.
    w_mat = jnp.transpose(weight_oihw, (0, 2, 3, 1)).reshape(G, 9 * Cin)
    w_mat = jnp.concatenate(
        [w_mat, bias.reshape(G, 1).astype(w_mat.dtype)], axis=1)   # (G, 9*Cin+1)

    kernel = functools.partial(_single_layer_kernel, H=H, W=W)

    out_flat = pl.pallas_call(
        kernel,
        out_shape=jax.ShapeDtypeStruct((N, Cin + G, HW), x_nchw.dtype),
        grid_spec=pltpu.PrefetchScalarGridSpec(
            num_scalar_prefetch=0,
            grid=(grid_n,),
            in_specs=[
                pl.BlockSpec((Nb, Cin, HW), lambda n: (n, 0, 0)),
                pl.BlockSpec((G, 9 * Cin + 1), lambda n: (0, 0)),
            ],
            out_specs=pl.BlockSpec((Nb, Cin + G, HW), lambda n: (n, 0, 0)),
            scratch_shapes=[pltpu.VMEM((9 * Cin + 1, Nb * HW), jnp.float32)],
        ),
        compiler_params=pltpu.CompilerParams(
            dimension_semantics=("parallel",)),
    )(x_flat, w_mat)

    # Metadata-only reshape back to NCHW (matches PyTorch output layout).
    return out_flat.reshape(N, Cin + G, H, W)


def _reference_forward(x_nchw, weight_oihw, bias):
    """Plain-JAX reference (same as F.conv2d(pad=1) + relu + cat)."""
    conv = lax.conv_general_dilated(
        x_nchw, weight_oihw, window_strides=(1, 1), padding=((1, 1), (1, 1)),
        dimension_numbers=("NCHW", "OIHW", "NCHW"))
    conv = jnp.maximum(conv + bias.reshape(1, -1, 1, 1), 0.0)
    return jnp.concatenate([x_nchw, conv], axis=1)


if __name__ == "__main__":
    key = jax.random.PRNGKey(0)
    k_x, k_w, k_b = jax.random.split(key, 3)

    N, Cin, H, W = 2, 4, 16, 16
    growthRate = 8

    x = jax.random.normal(k_x, (N, Cin, H, W), dtype=jnp.float32)
    # Deterministic init mimicking nn.Conv2d's default uniform bound.
    fan_in = Cin * 3 * 3
    bound = 1.0 / (fan_in ** 0.5)
    weight = jax.random.uniform(k_w, (growthRate, Cin, 3, 3),
                                minval=-bound, maxval=bound, dtype=jnp.float32)
    bias = jax.random.uniform(k_b, (growthRate,),
                              minval=-bound, maxval=bound, dtype=jnp.float32)

    out = single_layer_forward(x, weight, bias)
    out = jax.block_until_ready(out)

    ref = _reference_forward(x, weight, bias)
    assert out.shape == (N, Cin + growthRate, H, W)
    assert jnp.allclose(out, ref, atol=1e-4, rtol=1e-4)

    print("KERNEL_OK")
</pallas_src>

<mosaic_0001>
module attributes {stable_mosaic.version = 11 : i64} {
  func.func @_single_layer_kernel(%arg0: i32, %arg1: memref<1x4x256xf32, #tpu.memory_space<vmem>>, %arg2: memref<8x37xf32, #tpu.memory_space<vmem>>, %arg3: memref<1x12x256xf32, #tpu.memory_space<vmem>>, %arg4: memref<37x256xf32, #tpu.memory_space<vmem>>) attributes {dimension_semantics = [#tpu.dimension_semantics<parallel>], iteration_bounds = array<i64: 2>, scalar_prefetch = 0 : i64, scratch_operands = 1 : i64, tpu.core_type = #tpu.core_type<tc>, window_params = [{transform_indices = @transform_0, window_bounds = array<i64: 1, 4, 256>}, {pipeline_mode = #tpu.pipeline_mode<synchronous>, transform_indices = @transform_1, window_bounds = array<i64: 8, 37>}, {transform_indices = @transform_2, window_bounds = array<i64: 1, 12, 256>}]} {
    %0 = tpu.iota {dimensions = array<i32: 1>} : vector<4x256xi32>
    %c16_i32 = arith.constant 16 : i32
    %c0_i32 = arith.constant 0 : i32
    %1 = arith.cmpi eq, %c16_i32, %c0_i32 : i32
    %c1_i32 = arith.constant 1 : i32
    %2 = arith.select %1, %c1_i32, %c16_i32 : i32
    %3 = vector.broadcast %2 : i32 to vector<4x256xi32>
    %4 = arith.remsi %0, %3 : vector<4x256xi32>
    %c0_i32_0 = arith.constant 0 : i32
    %5 = vector.broadcast %c0_i32_0 : i32 to vector<4x256xi32>
    %6 = arith.cmpi ne, %4, %5 : vector<4x256xi32>
    %c0_i32_1 = arith.constant 0 : i32
    %7 = vector.broadcast %c0_i32_1 : i32 to vector<4x256xi32>
    %8 = arith.cmpi slt, %4, %7 : vector<4x256xi32>
    %c0_i32_2 = arith.constant 0 : i32
    %9 = arith.cmpi slt, %2, %c0_i32_2 : i32
    %10 = vector.broadcast %9 : i1 to vector<4x256xi1>
    %11 = vector.broadcast %10 : vector<4x256xi1> to vector<4x256xi1>
    %12 = arith.xori %8, %11 : vector<4x256xi1>
    %13 = arith.andi %12, %6 : vector<4x256xi1>
    %14 = vector.broadcast %2 : i32 to vector<4x256xi32>
    %15 = arith.addi %4, %14 : vector<4x256xi32>
    %16 = arith.select %13, %15, %4 : vector<4x256xi1>, vector<4x256xi32>
    %c16_i32_3 = arith.constant 16 : i32
    %17 = vector.broadcast %c16_i32_3 : i32 to vector<4x256xi32>
    %18 = arith.cmpi sge, %0, %17 : vector<4x256xi32>
    %c240_i32 = arith.constant 240 : i32
    %19 = vector.broadcast %c240_i32 : i32 to vector<4x256xi32>
    %20 = arith.cmpi slt, %0, %19 : vector<4x256xi32>
    %c1_i32_4 = arith.constant 1 : i32
    %21 = vector.broadcast %c1_i32_4 : i32 to vector<4x256xi32>
    %22 = arith.cmpi sge, %16, %21 : vector<4x256xi32>
    %c14_i32 = arith.constant 14 : i32
    %23 = vector.broadcast %c14_i32 : i32 to vector<4x256xi32>
    %24 = arith.cmpi sle, %16, %23 : vector<4x256xi32>
    %cst = arith.constant 1.000000e+00 : f32
    %25 = vector.broadcast %cst : f32 to vector<1x256xf32>
    %c36 = arith.constant 36 : index
    %c0 = arith.constant 0 : index
    %26 = vector.load %arg4[%c36, %c0] : memref<37x256xf32, #tpu.memory_space<vmem>>, vector<1x256xf32>
    tpu.vector_store %arg4[%c36, %c0], %25 {strides = array<i32>} : memref<37x256xf32, #tpu.memory_space<vmem>>, vector<1x256xf32>,
    %c0_5 = arith.constant 0 : index
    %c0_6 = arith.constant 0 : index
    %c0_7 = arith.constant 0 : index
    %27 = vector.load %arg1[%c0_5, %c0_6, %c0_7] : memref<1x4x256xf32, #tpu.memory_space<vmem>>, vector<1x4x256xf32>
    %28 = vector.shape_cast %27 : vector<1x4x256xf32> to vector<4x256xf32>
    %c17_i32 = arith.constant 17 : i32
    %29 = tpu.dynamic_rotate %28 by %c17_i32 dim 1 : vector<4x256xf32>, i32 -> vector<4x256xf32>
    %30 = arith.andi %18, %22 : vector<4x256xi1>
    %cst_8 = arith.constant 0.000000e+00 : f32
    %31 = vector.broadcast %cst_8 : f32 to vector<4x256xf32>
    %32 = arith.select %30, %29, %31 : vector<4x256xi1>, vector<4x256xf32>
    %c0_9 = arith.constant 0 : index
    %c0_10 = arith.constant 0 : index
    %33 = vector.load %arg4[%c0_9, %c0_10] : memref<37x256xf32, #tpu.memory_space<vmem>>, vector<4x256xf32>
    tpu.vector_store %arg4[%c0_9, %c0_10], %32 {strides = array<i32>} : memref<37x256xf32, #tpu.memory_space<vmem>>, vector<4x256xf32>,
    %c16_i32_11 = arith.constant 16 : i32
    %34 = tpu.dynamic_rotate %28 by %c16_i32_11 dim 1 : vector<4x256xf32>, i32 -> vector<4x256xf32>
    %cst_12 = arith.constant 0.000000e+00 : f32
    %35 = vector.broadcast %cst_12 : f32 to vector<4x256xf32>
    %36 = arith.select %18, %34, %35 : vector<4x256xi1>, vector<4x256xf32>
    %c4 = arith.constant 4 : index
    %c0_13 = arith.constant 0 : index
    %37 = vector.load %arg4[%c4, %c0_13] : memref<37x256xf32, #tpu.memory_space<vmem>>, vector<4x256xf32>
    tpu.vector_store %arg4[%c4, %c0_13], %36 {strides = array<i32>} : memref<37x256xf32, #tpu.memory_space<vmem>>, vector<4x256xf32>,
    %c15_i32 = arith.constant 15 : i32
    %38 = tpu.dynamic_rotate %28 by %c15_i32 dim 1 : vector<4x256xf32>, i32 -> vector<4x256xf32>
    %39 = arith.andi %18, %24 : vector<4x256xi1>
    %cst_14 = arith.constant 0.000000e+00 : f32
    %40 = vector.broadcast %cst_14 : f32 to vector<4x256xf32>
    %41 = arith.select %39, %38, %40 : vector<4x256xi1>, vector<4x256xf32>
    %c8 = arith.constant 8 : index
    %c0_15 = arith.constant 0 : index
    %42 = vector.load %arg4[%c8, %c0_15] : memref<37x256xf32, #tpu.memory_space<vmem>>, vector<4x256xf32>
    tpu.vector_store %arg4[%c8, %c0_15], %41 {strides = array<i32>} : memref<37x256xf32, #tpu.memory_space<vmem>>, vector<4x256xf32>,
    %c1_i32_16 = arith.constant 1 : i32
    %43 = tpu.dynamic_rotate %28 by %c1_i32_16 dim 1 : vector<4x256xf32>, i32 -> vector<4x256xf32>
    %cst_17 = arith.constant 0.000000e+00 : f32
    %44 = vector.broadcast %cst_17 : f32 to vector<4x256xf32>
    %45 = arith.select %22, %43, %44 : vector<4x256xi1>, vector<4x256xf32>
    %c12 = arith.constant 12 : index
    %c0_18 = arith.constant 0 : index
    %46 = vector.load %arg4[%c12, %c0_18] : memref<37x256xf32, #tpu.memory_space<vmem>>, vector<4x256xf32>
    tpu.vector_store %arg4[%c12, %c0_18], %45 {strides = array<i32>} : memref<37x256xf32, #tpu.memory_space<vmem>>, vector<4x256xf32>,
    %c16 = arith.constant 16 : index
    %c0_19 = arith.constant 0 : index
    %47 = vector.load %arg4[%c16, %c0_19] : memref<37x256xf32, #tpu.memory_space<vmem>>, vector<4x256xf32>
    tpu.vector_store %arg4[%c16, %c0_19], %28 {strides = array<i32>} : memref<37x256xf32, #tpu.memory_space<vmem>>, vector<4x256xf32>,
    %c255_i32 = arith.constant 255 : i32
    %48 = tpu.dynamic_rotate %28 by %c255_i32 dim 1 : vector<4x256xf32>, i32 -> vector<4x256xf32>
    %cst_20 = arith.constant 0.000000e+00 : f32
    %49 = vector.broadcast %cst_20 : f32 to vector<4x256xf32>
    %50 = arith.select %24, %48, %49 : vector<4x256xi1>, vector<4x256xf32>
    %c20 = arith.constant 20 : index
    %c0_21 = arith.constant 0 : index
    %51 = vector.load %arg4[%c20, %c0_21] : memref<37x256xf32, #tpu.memory_space<vmem>>, vector<4x256xf32>
    tpu.vector_store %arg4[%c20, %c0_21], %50 {strides = array<i32>} : memref<37x256xf32, #tpu.memory_space<vmem>>, vector<4x256xf32>,
    %c241_i32 = arith.constant 241 : i32
    %52 = tpu.dynamic_rotate %28 by %c241_i32 dim 1 : vector<4x256xf32>, i32 -> vector<4x256xf32>
    %53 = arith.andi %20, %22 : vector<4x256xi1>
    %cst_22 = arith.constant 0.000000e+00 : f32
    %54 = vector.broadcast %cst_22 : f32 to vector<4x256xf32>
    %55 = arith.select %53, %52, %54 : vector<4x256xi1>, vector<4x256xf32>
    %c24 = arith.constant 24 : index
    %c0_23 = arith.constant 0 : index
    %56 = vector.load %arg4[%c24, %c0_23] : memref<37x256xf32, #tpu.memory_space<vmem>>, vector<4x256xf32>
    tpu.vector_store %arg4[%c24, %c0_23], %55 {strides = array<i32>} : memref<37x256xf32, #tpu.memory_space<vmem>>, vector<4x256xf32>,
    %c240_i32_24 = arith.constant 240 : i32
    %57 = tpu.dynamic_rotate %28 by %c240_i32_24 dim 1 : vector<4x256xf32>, i32 -> vector<4x256xf32>
    %cst_25 = arith.constant 0.000000e+00 : f32
    %58 = vector.broadcast %cst_25 : f32 to vector<4x256xf32>
    %59 = arith.select %20, %57, %58 : vector<4x256xi1>, vector<4x256xf32>
    %c28 = arith.constant 28 : index
    %c0_26 = arith.constant 0 : index
    %60 = vector.load %arg4[%c28, %c0_26] : memref<37x256xf32, #tpu.memory_space<vmem>>, vector<4x256xf32>
    tpu.vector_store %arg4[%c28, %c0_26], %59 {strides = array<i32>} : memref<37x256xf32, #tpu.memory_space<vmem>>, vector<4x256xf32>,
    %c239_i32 = arith.constant 239 : i32
    %61 = tpu.dynamic_rotate %28 by %c239_i32 dim 1 : vector<4x256xf32>, i32 -> vector<4x256xf32>
    %62 = arith.andi %20, %24 : vector<4x256xi1>
    %cst_27 = arith.constant 0.000000e+00 : f32
    %63 = vector.broadcast %cst_27 : f32 to vector<4x256xf32>
    %64 = arith.select %62, %61, %63 : vector<4x256xi1>, vector<4x256xf32>
    %c32 = arith.constant 32 : index
    %c0_28 = arith.constant 0 : index
    %65 = vector.load %arg4[%c32, %c0_28] : memref<37x256xf32, #tpu.memory_space<vmem>>, vector<4x256xf32>
    tpu.vector_store %arg4[%c32, %c0_28], %64 {strides = array<i32>} : memref<37x256xf32, #tpu.memory_space<vmem>>, vector<4x256xf32>,
    %c0_29 = arith.constant 0 : index
    %c0_30 = arith.constant 0 : index
    %66 = vector.load %arg2[%c0_29, %c0_30] : memref<8x37xf32, #tpu.memory_space<vmem>>, vector<8x37xf32>
    %c0_31 = arith.constant 0 : index
    %c0_32 = arith.constant 0 : index
    %67 = vector.load %arg4[%c0_31, %c0_32] : memref<37x256xf32, #tpu.memory_space<vmem>>, vector<37x256xf32>
    %cst_33 = arith.constant dense<0.000000e+00> : vector<8x256xf32>
    %68 = tpu.matmul %66, %67, %cst_33 {dimension_numbers = #tpu.dot_dimension_numbers<[1], [0], [0], [1], [0, 0, 1, 1], [], []>} : vector<8x37xf32>, vector<37x256xf32>, vector<8x256xf32> -> vector<8x256xf32>
    %cst_34 = arith.constant 0.000000e+00 : f32
    %69 = vector.broadcast %cst_34 : f32 to vector<8x256xf32>
    %70 = arith.maximumf %68, %69 : vector<8x256xf32>
    %c0_35 = arith.constant 0 : index
    %c0_36 = arith.constant 0 : index
    %c0_37 = arith.constant 0 : index
    %71 = vector.load %arg1[%c0_35, %c0_36, %c0_37] : memref<1x4x256xf32, #tpu.memory_space<vmem>>, vector<1x4x256xf32>
    %72 = vector.shape_cast %71 : vector<1x4x256xf32> to vector<4x256xf32>
    %73 = tpu.concatenate %72, %70 in 0 : vector<4x256xf32>, vector<8x256xf32> -> vector<12x256xf32>
    %c0_38 = arith.constant 0 : index
    %c0_39 = arith.constant 0 : index
    %c0_40 = arith.constant 0 : index
    %74 = vector.load %arg3[%c0_38, %c0_39, %c0_40] : memref<1x12x256xf32, #tpu.memory_space<vmem>>, vector<1x12x256xf32>
    %75 = vector.shape_cast %74 : vector<1x12x256xf32> to vector<12x256xf32>
    %76 = vector.shape_cast %73 : vector<12x256xf32> to vector<1x12x256xf32>
    tpu.vector_store %arg3[%c0_38, %c0_39, %c0_40], %76 {strides = array<i32>} : memref<1x12x256xf32, #tpu.memory_space<vmem>>, vector<1x12x256xf32>,
    return
  }
  func.func @transform_0(%arg0: i32) -> (i32, i32, i32) {
    %c0_i32 = arith.constant 0 : i32
    %c0_i32_0 = arith.constant 0 : i32
    %c0_i32_1 = arith.constant 0 : i32
    return %arg0, %c0_i32, %c0_i32_0 : i32, i32, i32
  }
  func.func @transform_1(%arg0: i32) -> (i32, i32) {
    %c0_i32 = arith.constant 0 : i32
    %c0_i32_0 = arith.constant 0 : i32
    %c0_i32_1 = arith.constant 0 : i32
    return %c0_i32, %c0_i32_0 : i32, i32
  }
  func.func @transform_2(%arg0: i32) -> (i32, i32, i32) {
    %c0_i32 = arith.constant 0 : i32
    %c0_i32_0 = arith.constant 0 : i32
    %c0_i32_1 = arith.constant 0 : i32
    return %arg0, %c0_i32, %c0_i32_0 : i32, i32, i32
  }
}

</mosaic_0001>

<llo_original>
// kernel: single_layer_forward.1
$region0: #{single_layer_forward.1}
  #allocation0 [shape = 'u32[]', space=smem, size = 0x4, offset = 0x4, fixed_abs, tag = 'smem constant byte address 0x4 - core index']
  #allocation1 [shape = 'u32[72,128]{1,0:T(1,128)}', space=vmem, size = 0x9000, scoped, tag = 'internal scratch']
  #allocation2 [shape = 'f32[37,256]{1,0:T(8,128)}', space=vmem, size = 0xa000, scoped, tag = 'scratch operand']
  %s0 = inlined_call_operand.vmem [shape: f32[2,4,256], index: 0, kind: input, shape index: {}]
  %s1 = inlined_call_operand.vmem [shape: f32[8,37], index: 1, kind: input, shape index: {}]
  %s2 = inlined_call_operand.vmem [shape: f32[2,12,256], index: 2, kind: output, shape index: {}]
  %s3 = sld [smem:[#allocation0]]
  $region41: #{single_layer_forward.1} parent=0
    _
  %s5 = ssub.s32 1, %s3
  %s6 = scalar_select 0, %s5, %s3
  loop: start=0, step=1, limit=4
  $region2: #{single_layer_forward.1} parent=0 // loop_pre_header
    _
  $region3: #{single_layer_forward.1} parent=0 // loop_header
    %s8 = sphi 0, %s12
    %p9 = scmp.ge.s32.totalorder %s8, 4
    %s18 = sphi 0, %s20
    %s21 = sphi 0, %s18
    %s22 = sphi 0, %s21
    %s38 = sphi 0, %s22
    %s42 = sphi 0, %s42
    %s44 = sphi 0, %s42
    %s45 = sphi 0, %s44
    %s59 = sphi 0, %s45
    %s65 = sphi 0, %s67
    %s68 = sphi 0, %s65
    %s69 = sphi 0, %s68
    %s85 = sphi 0, %s69
  $region4: #{single_layer_forward.1} parent=0 // loop_header_branch
    %11 = sbr.rel (%p9) target = $region8
  $region5: #{single_layer_forward.1} parent=0 // loop_body
    %s13 = ssub.s32 %s8, 1
    %s14 = ssub.s32 %s8, 2
    %s15 = sadd.s32 %s8, 1
    %s16 = ssub.s32 %s8, %s15
    %p17 = scmp.eq.s32.totalorder %s16, 0
    %s19 = sadd.s32 %s18, 1
    %s20 = scalar_select %p17, %s18, %s19
    %p23 = pneg %p17
    %p24 = scmp.eq.s32.totalorder %s8, 1
    %p25 = por %p23, %p24
    %p26 = scmp.ne.s32.totalorder %s18, %s21
    %p27 = scmp.eq.s32.totalorder %s8, 0
    %p28 = por %p26, %p27
    %p29 = scmp.ne.s32.totalorder %s18, %s21
    %p30 = scmp.eq.s32.totalorder %s13, 1
    %p31 = por %p29, %p30
    %p32 = scmp.ne.s32.totalorder %s21, %s22
    %p33 = scmp.eq.s32.totalorder %s13, 0
    %p34 = por %p32, %p33
    %p35 = scmp.ne.s32.totalorder %s21, %s22
    %p36 = scmp.eq.s32.totalorder %s14, 1
    %p37 = por %p35, %p36
    %p39 = scmp.ne.s32.totalorder %s22, %s38
    %p40 = scmp.eq.s32.totalorder %s14, 0
    %p41 = por %p39, %p40
    %s43 = sadd.s32 %s42, 1
    %p46 = scmp.eq.s32.totalorder %s8, 1
    %p47 = scmp.ne.s32.totalorder %s42, %s44
    %p48 = scmp.eq.s32.totalorder %s8, 0
    %p49 = por %p47, %p48
    %p50 = scmp.ne.s32.totalorder %s42, %s44
    %p51 = scmp.eq.s32.totalorder %s13, 1
    %p52 = por %p50, %p51
    %p53 = scmp.ne.s32.totalorder %s44, %s45
    %p54 = scmp.eq.s32.totalorder %s13, 0
    %p55 = por %p53, %p54
    %p56 = scmp.ne.s32.totalorder %s44, %s45
    %p57 = scmp.eq.s32.totalorder %s14, 1
    %p58 = por %p56, %p57
    %p60 = scmp.ne.s32.totalorder %s45, %s59
    %p61 = scmp.eq.s32.totalorder %s14, 0
    %p62 = por %p60, %p61
    %s63 = ssub.s32 %s8, %s15
    %p64 = scmp.eq.s32.totalorder %s63, 0
    %s66 = sadd.s32 %s65, 1
    %s67 = scalar_select %p64, %s65, %s66
    %p70 = pneg %p64
    %p71 = scmp.eq.s32.totalorder %s8, 1
    %p72 = por %p70, %p71
    %p73 = scmp.ne.s32.totalorder %s65, %s68
    %p74 = scmp.eq.s32.totalorder %s8, 0
    %p75 = por %p73, %p74
    %p76 = scmp.ne.s32.totalorder %s65, %s68
    %p77 = scmp.eq.s32.totalorder %s13, 1
    %p78 = por %p76, %p77
    %p79 = scmp.ne.s32.totalorder %s68, %s69
    %p80 = scmp.eq.s32.totalorder %s13, 0
    %p81 = por %p79, %p80
    %p82 = scmp.ne.s32.totalorder %s68, %s69
    %p83 = scmp.eq.s32.totalorder %s14, 1
    %p84 = por %p82, %p83
    %p86 = scmp.ne.s32.totalorder %s69, %s85
    %p87 = scmp.eq.s32.totalorder %s14, 0
    %p88 = por %p86, %p87
    %p89 = scmp.le.s32.totalorder 1, %s8
    %p90 = scmp.lt.s32.totalorder %s8, 3
    %p91 = pnand %p89, %p90
    %p92 = pneg %p91
    // Predicated region
    $region9: #{single_layer_forward.1} parent=5 // pred_check
      _
    $region10: #{single_layer_forward.1} parent=5 // pred_check_branch
      %94 = sbr.rel (%p91) target = $region12
    $region11: #{single_layer_forward.1} parent=5 // pred_region
      %s95 = ssub.s32 %s8, 1
      // Predicated region
      $region13: #{single_layer_forward.1} parent=11 // pred_check
        %p96 = pneg %p55
      $region14: #{single_layer_forward.1} parent=11 // pred_check_branch
        %98 = sbr.rel (%p96) target = $region16
      $region15: #{single_layer_forward.1} parent=11 // pred_region
        _
      $region16: #{single_layer_forward.1} parent=11 // pred_fallthru
        _
    $region12: #{single_layer_forward.1} parent=5 // pred_fallthru
      _
    %p99 = scmp.lt.s32.totalorder %s8, 2
    // Predicated region
    $region17: #{single_layer_forward.1} parent=5 // pred_check
      %p100 = pneg %p99
    $region18: #{single_layer_forward.1} parent=5 // pred_check_branch
      %102 = sbr.rel (%p100) target = $region20
    $region19: #{single_layer_forward.1} parent=5 // pred_region
      // Predicated region
      $region21: #{single_layer_forward.1} parent=19 // pred_check
        %p103 = pneg %p28
      $region22: #{single_layer_forward.1} parent=19 // pred_check_branch
        %105 = sbr.rel (%p103) target = $region24
      $region23: #{single_layer_forward.1} parent=19 // pred_region
        %p106 = scmp.lt.s32.totalorder %s8, 1
        %s107 = scalar_select %p106, %s8, 1
        %s108 = smul.addr %s107, 2
        %s109 = smul.addr %s108, 4
        %s110 = scalar_lea.vmem %s0, %s109
      $region24: #{single_layer_forward.1} parent=19 // pred_fallthru
        _
    $region20: #{single_layer_forward.1} parent=5 // pred_fallthru
      _
    %p111 = scmp.le.s32.totalorder 1, %s8
    %p112 = scmp.lt.s32.totalorder %s8, 3
    %p113 = pnand %p111, %p112
    %p114 = pneg %p113
    // Predicated region
    $region25: #{single_layer_forward.1} parent=5 // pred_check
      _
    $region26: #{single_layer_forward.1} parent=5 // pred_check_branch
      %116 = sbr.rel (%p113) target = $region28
    $region27: #{single_layer_forward.1} parent=5 // pred_region
      %s117 = ssub.s32 %s8, 1
      %p118 = scmp.lt.s32.totalorder %s13, 1
      %s119 = scalar_select %p118, %s13, 1
      %s120 = smul.addr %s119, 2
      %s121 = smul.addr %s120, 4
      %s122 = scalar_lea.vmem %s0, %s121
      %p123 = pneg %p34
      %p124 = pneg %p31
      %p125 = pneg %p55
      %p126 = pneg %p52
      %p127 = pneg %p81
      %p128 = pneg %p78
      %p129 = scmp.lt.s32.totalorder %s13, 1
      %s130 = scalar_select %p129, %s13, 1
      %s131 = smul.addr %s130, 4
      %s132 = smul.addr %s131, 8
      %s133 = scalar_lea.vmem %s2, %s132
      %p134 = scmp.lt.s32.totalorder %s13, 1
      %s135 = scalar_select %p134, %s13, 1
      %s136 = smul.addr %s135, 2
      %s137 = smul.addr %s136, 4
      %s138 = scalar_lea.vmem %s0, %s137
      %p139 = scmp.lt.s32.totalorder %s13, 1
      %s140 = scalar_select %p139, %s13, 1
      %s141 = smul.addr %s140, 4
      %s142 = smul.addr %s141, 8
      %s143 = scalar_lea.vmem %s2, %s142
      %v144 = vlaneseq
      %v145 = vand.u32 %v144, 127
      %v146 = vadd.s32 %v145, 128
      %vm147 = vcmp.lt.s32.totalorder %v145, 0
      %v148 = vsub.s32 0, %v145
      %v149 = vsel %vm147, %v148, %v145
      %v150 = vshrl.u32 %v149, 4
      %v151 = vand.u32 %v149, 15
      %v152 = vsub.s32 0, %v151
      %v153 = vsel %vm147, %v152, %v151
      %vm154 = vcmp.lt.s32.totalorder %v146, 0
      %v155 = vsub.s32 0, %v146
      %v156 = vsel %vm154, %v155, %v146
      %v157 = vshrl.u32 %v156, 4
      %v158 = vand.u32 %v156, 15
      %v159 = vsub.s32 0, %v158
      %v160 = vsel %vm154, %v159, %v158
      %vm161 = vcmp.ne.s32.totalorder %v153, 0
      %vm162 = vcmp.ne.s32.totalorder %v160, 0
      %vm163 = vcmp.lt.s32.totalorder %v153, 0
      %vm164 = vcmp.lt.s32.totalorder %v160, 0
      %vm165 = vmand %vm163, %vm161
      %vm166 = vmand %vm164, %vm162
      %v167 = vadd.s32 %v153, 16
      %v168 = vadd.s32 %v160, 16
      %v169 = vsel %vm165, %v167, %v153
      %v170 = vsel %vm166, %v168, %v160
      %vm171 = vcmp.ge.s32.totalorder %v145, 16
      %vm172 = vcmp.ge.s32.totalorder %v146, 16
      %vm173 = vcmp.lt.s32.totalorder %v145, 240
      %vm174 = vcmp.lt.s32.totalorder %v146, 240
      %vm175 = vcmp.ge.s32.totalorder %v169, 1
      %vm176 = vcmp.ge.s32.totalorder %v170, 1
      %vm177 = vcmp.le.s32.totalorder %v169, 14
      %vm178 = vcmp.le.s32.totalorder %v170, 14
      %v179 = vlaneseq
      %vm180 = vcmp.ge.s32.totalorder %v179, 0
      %vm181 = vcmp.lt.s32.totalorder %v179, 256
      %vm182 = vmand %vm180, %vm181
      %s183 = scalar_lea.vmem [#allocation2], 68
      %184 = vst.msk [vmem:[%s183] ss:$8 sm:$0x3] %vm182, 1.0
      %185 = vst.msk [vmem:[%s183] ss:$8 sm:$0x0] %vm182, 1.0
      %v186 = vld [vmem:[%s138] sm:$0xff]
      %188 = vst [vmem:[#allocation1] ss:$2 sm:$0xff] %v186
      %v189 = vld.sshfl [vmem:[#allocation1] sm:$0xff pattern:$0x75316420]
      %v190 = vld.sshfl [vmem:[#allocation1 + $0x8] sm:$0xff pattern:$0x75316420]
      %193 = vrot.lane.b32.xlu0 %v189, 17
      %v194 = vpop.permute.xlu0 %193
      %195 = vrot.lane.b32.xlu0 %v190, 17
      %v196 = vpop.permute.xlu0 %195
      %vm197 = vcmp.lt.s32.totalorder %v145, 17
      %v198 = vsel %vm197, %v194, %v196
      %v199 = vsel %vm197, %v196, %v194
      %vm200 = vmand %vm171, %vm175
      %vm201 = vmand %vm172, %vm176
      %v202 = vsel %vm200, %v199, 0.0
      %v203 = vsel %vm201, %v198, 0.0
      %204 = vst [vmem:[#allocation2] sm:$0xf] %v202
      %205 = vst [vmem:[#allocation2 + $0x8] sm:$0xf] %v203
      %206 = vst [vmem:[#allocation1] ss:$2 sm:$0xff] %v186
      %v207 = vld.sshfl [vmem:[#allocation1] sm:$0xff pattern:$0x75316420]
      %v208 = vld.sshfl [vmem:[#allocation1 + $0x8] sm:$0xff pattern:$0x75316420]
      %211 = vrot.lane.b32.xlu0 %v207, 16
      %v212 = vpop.permute.xlu0 %211
      %213 = vrot.lane.b32.xlu0 %v208, 16
      %v214 = vpop.permute.xlu0 %213
      %vm215 = vcmp.lt.s32.totalorder %v145, 16
      %v216 = vsel %vm215, %v212, %v214
      %v217 = vsel %vm215, %v214, %v212
      %v218 = vsel %vm171, %v217, 0.0
      %v219 = vsel %vm172, %v216, 0.0
      %v222 = vrot.slane %v218, 4
      %v223 = vrot.slane %v219, 4
      %226 = vst [vmem:[#allocation2] sm:$0xf0] %v222
      %227 = vst [vmem:[#allocation2 + $0x8] sm:$0xf0] %v223
      %228 = vst [vmem:[#allocation1] ss:$2 sm:$0xff] %v186
      %v229 = vld.sshfl [vmem:[#allocation1] sm:$0xff pattern:$0x75316420]
      %v230 = vld.sshfl [vmem:[#allocation1 + $0x8] sm:$0xff pattern:$0x75316420]
      %233 = vrot.lane.b32.xlu0 %v229, 15
      %v234 = vpop.permute.xlu0 %233
      %235 = vrot.lane.b32.xlu0 %v230, 15
      %v236 = vpop.permute.xlu0 %235
      %vm237 = vcmp.lt.s32.totalorder %v145, 15
      %v238 = vsel %vm237, %v234, %v236
      %v239 = vsel %vm237, %v236, %v234
      %vm240 = vmand %vm171, %vm177
      %vm241 = vmand %vm172, %vm178
      %v242 = vsel %vm240, %v239, 0.0
      %v243 = vsel %vm241, %v238, 0.0
      %244 = vst [vmem:[#allocation2 + $0x10] sm:$0xf] %v242
      %245 = vst [vmem:[#allocation2 + $0x18] sm:$0xf] %v243
      %246 = vst [vmem:[#allocation1] ss:$2 sm:$0xff] %v186
      %v247 = vld.sshfl [vmem:[#allocation1] sm:$0xff pattern:$0x75316420]
      %v248 = vld.sshfl [vmem:[#allocation1 + $0x8] sm:$0xff pattern:$0x75316420]
      %251 = vrot.lane.b32.xlu0 %v247, 1
      %v252 = vpop.permute.xlu0 %251
      %253 = vrot.lane.b32.xlu0 %v248, 1
      %v254 = vpop.permute.xlu0 %253
      %vm255 = vcmp.lt.s32.totalorder %v145, 1
      %v256 = vsel %vm255, %v252, %v254
      %v257 = vsel %vm255, %v254, %v252
      %v258 = vsel %vm175, %v257, 0.0
      %v259 = vsel %vm176, %v256, 0.0
      %v262 = vrot.slane %v258, 4
      %v263 = vrot.slane %v259, 4
      %266 = vst [vmem:[#allocation2 + $0x10] sm:$0xf0] %v262
      %267 = vst [vmem:[#allocation2 + $0x18] sm:$0xf0] %v263
      %268 = vst [vmem:[#allocation1] ss:$2 sm:$0xff] %v186
      %v269 = vld.sshfl [vmem:[#allocation1] sm:$0xff pattern:$0x75316420]
      %v270 = vld.sshfl [vmem:[#allocation1 + $0x8] sm:$0xff pattern:$0x75316420]
      %273 = vst [vmem:[#allocation2 + $0x20] sm:$0xf] %v269
      %274 = vst [vmem:[#allocation2 + $0x28] sm:$0xf] %v270
      %275 = vst [vmem:[#allocation1] ss:$2 sm:$0xff] %v186
      %v276 = vld.sshfl [vmem:[#allocation1] sm:$0xff pattern:$0x75316420]
      %v277 = vld.sshfl [vmem:[#allocation1 + $0x8] sm:$0xff pattern:$0x75316420]
      %280 = vrot.lane.b32.xlu0 %v276, 127
      %v281 = vpop.permute.xlu0 %280
      %282 = vrot.lane.b32.xlu0 %v277, 127
      %v283 = vpop.permute.xlu0 %282
      %vm284 = vcmp.lt.s32.totalorder %v145, 127
      %v285 = vsel %vm284, %v281, %v283
      %v286 = vsel %vm284, %v283, %v281
      %v287 = vsel %vm177, %v285, 0.0
      %v288 = vsel %vm178, %v286, 0.0
      %v291 = vrot.slane %v287, 4
      %v292 = vrot.slane %v288, 4
      %295 = vst [vmem:[#allocation2 + $0x20] sm:$0xf0] %v291
      %296 = vst [vmem:[#allocation2 + $0x28] sm:$0xf0] %v292
      %297 = vst [vmem:[#allocation1] ss:$2 sm:$0xff] %v186
      %v298 = vld.sshfl [vmem:[#allocation1] sm:$0xff pattern:$0x75316420]
      %v299 = vld.sshfl [vmem:[#allocation1 + $0x8] sm:$0xff pattern:$0x75316420]
      %302 = vrot.lane.b32.xlu0 %v298, 113
      %v303 = vpop.permute.xlu0 %302
      %304 = vrot.lane.b32.xlu0 %v299, 113
      %v305 = vpop.permute.xlu0 %304
      %vm306 = vcmp.lt.s32.totalorder %v145, 113
      %v307 = vsel %vm306, %v303, %v305
      %v308 = vsel %vm306, %v305, %v303
      %vm309 = vmand %vm173, %vm175
      %vm310 = vmand %vm174, %vm176
      %v311 = vsel %vm309, %v307, 0.0
      %v312 = vsel %vm310, %v308, 0.0
      %313 = vst [vmem:[#allocation2 + $0x30] sm:$0xf] %v311
      %314 = vst [vmem:[#allocation2 + $0x38] sm:$0xf] %v312
      %315 = vst [vmem:[#allocation1] ss:$2 sm:$0xff] %v186
      %v316 = vld.sshfl [vmem:[#allocation1] sm:$0xff pattern:$0x75316420]
      %v317 = vld.sshfl [vmem:[#allocation1 + $0x8] sm:$0xff pattern:$0x75316420]
      %320 = vrot.lane.b32.xlu0 %v316, 112
      %v321 = vpop.permute.xlu0 %320
      %322 = vrot.lane.b32.xlu0 %v317, 112
      %v323 = vpop.permute.xlu0 %322
      %vm324 = vcmp.lt.s32.totalorder %v145, 112
      %v325 = vsel %vm324, %v321, %v323
      %v326 = vsel %vm324, %v323, %v321
      %v327 = vsel %vm173, %v325, 0.0
      %v328 = vsel %vm174, %v326, 0.0
      %v331 = vrot.slane %v327, 4
      %v332 = vrot.slane %v328, 4
      %335 = vst [vmem:[#allocation2 + $0x30] sm:$0xf0] %v331
      %336 = vst [vmem:[#allocation2 + $0x38] sm:$0xf0] %v332
      %337 = vst [vmem:[#allocation1] ss:$2 sm:$0xff] %v186
      %v338 = vld.sshfl [vmem:[#allocation1] sm:$0xff pattern:$0x75316420]
      %v339 = vld.sshfl [vmem:[#allocation1 + $0x8] sm:$0xff pattern:$0x75316420]
      %342 = vrot.lane.b32.xlu0 %v338, 111
      %v343 = vpop.permute.xlu0 %342
      %344 = vrot.lane.b32.xlu0 %v339, 111
      %v345 = vpop.permute.xlu0 %344
      %vm346 = vcmp.lt.s32.totalorder %v145, 111
      %v347 = vsel %vm346, %v343, %v345
      %v348 = vsel %vm346, %v345, %v343
      %vm349 = vmand %vm173, %vm177
      %vm350 = vmand %vm174, %vm178
      %v351 = vsel %vm349, %v347, 0.0
      %v352 = vsel %vm350, %v348, 0.0
      %353 = vst [vmem:[#allocation2 + $0x40] sm:$0xf] %v351
      %354 = vst [vmem:[#allocation2 + $0x48] sm:$0xf] %v352
      %v355 = vld [vmem:[%s1] sm:$0xff]
      %v356 = vld [vmem:[#allocation2] sm:$0xff]
      %v357 = vld [vmem:[#allocation2 + $0x8] sm:$0xff]
      %v358 = vld [vmem:[#allocation2 + $0x10] sm:$0xff]
      %v359 = vld [vmem:[#allocation2 + $0x18] sm:$0xff]
      %v360 = vld [vmem:[#allocation2 + $0x20] sm:$0xff]
      %v361 = vld [vmem:[#allocation2 + $0x28] sm:$0xff]
      %v362 = vld [vmem:[#allocation2 + $0x30] sm:$0xff]
      %v363 = vld [vmem:[#allocation2 + $0x38] sm:$0xff]
      %v364 = vld [vmem:[#allocation2 + $0x40] sm:$0x1f]
      %v365 = vld [vmem:[#allocation2 + $0x48] sm:$0x1f]
      %vm366 = vcmask 302080
      %v368 = vsel %vm366, %v355, 0
      %vm370 = vcmask 1044480
      %v372 = vsel %vm370, %v364, 0
      %v375 = vsel %vm370, %v365, 0
      %377 = vmatpush.msra.mxu0 0.0
      %378 = vmatpush.msra.mxu0 0.0
      %379 = vmatpush.msra.mxu0 0.0
      %380 = vmatpush.msra.mxu0 0.0
      %381 = vmatpush.msra.mxu0 0.0
      %382 = vmatpush.msra.mxu0 0.0
      %383 = vmatpush.msra.mxu0 0.0
      %384 = vmatpush.msra.mxu0 0.0
      %385 = vmatpush.msra.mxu0 0.0
      %386 = vmatpush.msra.mxu0 0.0
      %387 = vmatpush.msra.mxu0 0.0
      %388 = vmatpush.msra.mxu0 %v372
      %389 = vmatpush.msra.mxu0 %v362
      %390 = vmatpush.msra.mxu0 %v360
      %391 = vmatpush.msra.mxu0 %v358
      %392 = vmatpush.msra.mxu0 %v356
      %393 = vmatmul.f32.gmra.mxu0 %v368
      %v394 = vpop.f32.mrf.mxu0
      %v395 = vadd.f32 0.0, %v394
      %396 = vdwg.mxu0
      %397 = vmatpush.msra.mxu0 0.0
      %398 = vmatpush.msra.mxu0 0.0
      %399 = vmatpush.msra.mxu0 0.0
      %400 = vmatpush.msra.mxu0 0.0
      %401 = vmatpush.msra.mxu0 0.0
      %402 = vmatpush.msra.mxu0 0.0
      %403 = vmatpush.msra.mxu0 0.0
      %404 = vmatpush.msra.mxu0 0.0
      %405 = vmatpush.msra.mxu0 0.0
      %406 = vmatpush.msra.mxu0 0.0
      %407 = vmatpush.msra.mxu0 0.0
      %408 = vmatpush.msra.mxu0 %v375
      %409 = vmatpush.msra.mxu0 %v363
      %410 = vmatpush.msra.mxu0 %v361
      %411 = vmatpush.msra.mxu0 %v359
      %412 = vmatpush.msra.mxu0 %v357
      %413 = vmatmul.f32.gmra.mxu0 %v368
      %v414 = vpop.f32.mrf.mxu0
      %v415 = vadd.f32 0.0, %v414
      %416 = vdwg.mxu0
      %v417 = vmax.f32 %v395, 0.0
      %v418 = vmax.f32 %v415, 0.0
      %v419 = vld [vmem:[%s138] sm:$0xff]
      %421 = vst [vmem:[#allocation1] ss:$2 sm:$0xff] %v419
      %v422 = vld.sshfl [vmem:[#allocation1] sm:$0xff pattern:$0x75316420]
      %v423 = vld.sshfl [vmem:[#allocation1 + $0x8] sm:$0xff pattern:$0x75316420]
      %v428 = vrot.slane %v417, 4
      %v429 = vrot.slane %v418, 4
      %vm432 = vcmask 1043456
      %v433 = vsel %vm432, %v422, %v428
      %v434 = vsel %vm432, %v423, %v429
      %435 = vst [vmem:[%s143] sm:$0xff] %v433
      %436 = vst [vmem:[%s143 + $0x8] sm:$0xff] %v434
      %437 = vst [vmem:[%s143 + $0x10] sm:$0xf] %v428
      %438 = vst [vmem:[%s143 + $0x18] sm:$0xf] %v429
      %p439 = scmp.lt.s32.totalorder %s13, 1
      %s440 = scalar_select %p439, %s13, 1
      %s441 = smul.addr %s440, 4
      %s442 = smul.addr %s441, 8
      %s443 = scalar_lea.vmem %s2, %s442
      // Predicated region
      $region29: #{single_layer_forward.1} parent=27 // pred_check
        %p444 = pneg %p78
      $region30: #{single_layer_forward.1} parent=27 // pred_check_branch
        %446 = sbr.rel (%p444) target = $region32
      $region31: #{single_layer_forward.1} parent=27 // pred_region
        _
      $region32: #{single_layer_forward.1} parent=27 // pred_fallthru
        _
    $region28: #{single_layer_forward.1} parent=5 // pred_fallthru
      _
    %p447 = scmp.le.s32.totalorder 2, %s8
    // Predicated region
    $region33: #{single_layer_forward.1} parent=5 // pred_check
      %p448 = pneg %p447
    $region34: #{single_layer_forward.1} parent=5 // pred_check_branch
      %450 = sbr.rel (%p448) target = $region36
    $region35: #{single_layer_forward.1} parent=5 // pred_region
      %s451 = ssub.s32 %s8, 2
      // Predicated region
      $region37: #{single_layer_forward.1} parent=35 // pred_check
        %p452 = pneg %p84
      $region38: #{single_layer_forward.1} parent=35 // pred_check_branch
        %454 = sbr.rel (%p452) target = $region40
      $region39: #{single_layer_forward.1} parent=35 // pred_region
        %p455 = scmp.lt.s32.totalorder %s14, 1
        %s456 = scalar_select %p455, %s14, 1
        %s457 = smul.addr %s456, 4
        %s458 = smul.addr %s457, 8
        %s459 = scalar_lea.vmem %s2, %s458
      $region40: #{single_layer_forward.1} parent=35 // pred_fallthru
        _
    $region36: #{single_layer_forward.1} parent=5 // pred_fallthru
      _
  $region6: #{single_layer_forward.1} parent=0 // loop_footer
    %s12 = sadd.s32 1, %s8
  $region7: #{single_layer_forward.1} parent=0 // loop_footer_branch
    %7 = sbr.rel target = $region3
  $region8: #{single_layer_forward.1} parent=0 // loop_exit
    _

</llo_original>
